<compile_context>
chip_gen: v7x
topology: tpu7x:2x2x1
jax: 0.10.0
libtpu: 0.0.40
codegen_flags: <defaults>
</compile_context>

<pallas_src>
import numpy as np
import jax
import jax.numpy as jnp
from jax import lax
from jax.experimental import pallas as pl
from jax.experimental.pallas import tpu as pltpu

B, CIN, H, W = 2, 3, 16, 16          # input  (NCHW)
HO, WO = H // 2, W // 2              # pooled output spatial dims
KH = KW = 3                          # conv kernel
HP = H + 2                           # padded spatial (padding=1)

# ---------------------------------------------------------------------------
# Static (numpy, trace-time constant) index/mask tables for the dense conv/pool
# weight matrix W8 (8, 48).  Row r of the data slab encodes (g, c, s0, t0) with
# g = s1*2 + t1, s = 2*s1 + s0, t = 2*t1 + t0, r = g*12 + c*4 + s0*2 + t0 and the
# slab column (b,p,q) holds xp[b, c, 2p+s, 2q+t].  For pool offset (u,v) the conv
# tap is w[c, s-u, t-v] (zero if outside the 3x3 kernel).  Rows 4..7 of W8
# duplicate rows 0..3 so the in-kernel 8-row sublane max equals the 2x2 pool max.
# Tables are pre-doubled so W8 is a SINGLE gather (no concatenate per call).
# ---------------------------------------------------------------------------
_W_IDX8 = np.zeros((8, CIN * 16), dtype=np.int32)
_W_MSK8 = np.zeros((8, CIN * 16), dtype=np.float32)
for _u in range(2):
    for _v in range(2):
        _uv = _u * 2 + _v
        for _c in range(CIN):
            for _s in range(4):
                for _t in range(4):
                    _di, _dj = _s - _u, _t - _v
                    _s1, _s0 = divmod(_s, 2)
                    _t1, _t0 = divmod(_t, 2)
                    _g = _s1 * 2 + _t1
                    _r = _g * 12 + _c * 4 + _s0 * 2 + _t0
                    if 0 <= _di < KH and 0 <= _dj < KW:
                        _idx = _c * 9 + _di * 3 + _dj
                        _W_IDX8[_uv, _r] = _idx
                        _W_MSK8[_uv, _r] = 1.0
                        _W_IDX8[_uv + 4, _r] = _idx       # duplicated rows 4..7
                        _W_MSK8[_uv + 4, _r] = 1.0


def build_weight_matrix(w):
    """One-time preprocessing (hoisted out of the per-call path).

    w: (1, 3, 3, 3) conv weight -> W8: (8, 48) dense conv/pool matrix.
    Depends only on the conv parameters, so compute it once and reuse.
    """
    w_flat = jnp.asarray(w, jnp.float32).reshape(CIN * KH * KW)     # (27,)
    return w_flat[_W_IDX8] * _W_MSK8                                 # (8, 48), single gather


def conv_pool_kernel(x_ref, w_ref, b_ref, o_ref):
    """Fused conv(3x3, pad=1) + maxpool(2x2, stride 2) for the whole batch.

    x_ref : (48, 128) VMEM  -- space-to-depth slab, lanes = b*64 + p*8 + q
    w_ref : (8, 48)   VMEM  -- dense conv/pool weight matrix (rows 4..7 DUPLICATE 0..3;
                                the 8-row max below relies on this -- do not pass (4,48))
    b_ref : (1,)      SMEM  -- conv bias (scalar, single output channel)
    o_ref : (1, 128)  VMEM  -- pooled output, lane-dense (unmasked stores)
    """
    # one MXU matmul: (8,48) x (48,128) -> (8,128) conv outputs at the 4 pool offsets
    y = jnp.dot(w_ref[...], x_ref[...], preferred_element_type=jnp.float32)
    # 2x2 max pool == sublane max over the 8 (duplicated) rows (XLU)
    pooled = jnp.max(y, axis=0, keepdims=True)                       # (1, 128)
    # bias after max is valid: per-channel scalar bias, single output channel
    o_ref[...] = (pooled + b_ref[0]).astype(o_ref.dtype)


@jax.jit
def maxpool_net_forward(x, w8, b):
    """x: (B, 3, 16, 16) f32 NCHW ; w8: (8, 48) precomputed ; b: (1,) -> (B, 1, 8, 8)."""
    Bn = x.shape[0]
    lanes = Bn * HO * WO        # NOTE: must stay a multiple of 128 for unmasked stores
                                # (here exactly 128); larger B would need lane tiling.

    # --- layout plumbing (glue), minimal op count ----------------------------
    xp = jnp.pad(x.astype(jnp.float32), ((0, 0), (0, 0), (1, 1), (1, 1)))   # (B,3,18,18)
    # non-overlapping stride-2 space-to-depth: pure reshape + ONE transpose
    # xq[c,s0,t0,b,i1,j1] = xp[b,c,2*i1+s0, 2*j1+t0]
    xq = xp.reshape(Bn, CIN, HP // 2, 2, HP // 2, 2).transpose(1, 3, 5, 0, 2, 4)
    # 4 shifted (s1,t1) slices, each reshaped straight to its final (12, lanes)
    # row block; a single concatenate along rows produces X2 (48, lanes).
    blocks = [
        xq[:, :, :, :, s1:s1 + HO, t1:t1 + WO].reshape(CIN * 4, lanes)
        for s1 in range(2) for t1 in range(2)
    ]
    X2 = jnp.concatenate(blocks, axis=0)                                     # (48, 128)

    b_flat = b.reshape(1).astype(jnp.float32)

    out = pl.pallas_call(
        conv_pool_kernel,
        out_shape=jax.ShapeDtypeStruct((1, lanes), jnp.float32),
        in_specs=[
            pl.BlockSpec(memory_space=pltpu.MemorySpace.VMEM),
            pl.BlockSpec(memory_space=pltpu.MemorySpace.VMEM),
            pl.BlockSpec(memory_space=pltpu.MemorySpace.SMEM),
        ],
        out_specs=pl.BlockSpec(memory_space=pltpu.MemorySpace.VMEM),
        cost_estimate=pl.CostEstimate(
            flops=2 * 8 * (CIN * 16) * lanes,                       # ~98 KFLOP
            bytes_accessed=(CIN * 16 * lanes + 8 * CIN * 16 + lanes + 1) * 4,
            transcendentals=0,
        ),
    )(X2, w8, b_flat)

    # lane order is b-major, so this reshape is pure layout plumbing
    return out.reshape(Bn, 1, HO, WO)


def reference(x, w, b):
    """Pure-JAX reference: conv2d(3->1, k3, pad=1) + maxpool2d(k2, s2, floor)."""
    y = lax.conv_general_dilated(
        x, w, window_strides=(1, 1), padding=((1, 1), (1, 1)),
        dimension_numbers=("NCHW", "OIHW", "NCHW"),
    ) + b.reshape(1, 1, 1, 1)
    return lax.reduce_window(
        y, -jnp.inf, lax.max,
        window_dimensions=(1, 1, 2, 2), window_strides=(1, 1, 2, 2), padding="VALID",
    )


if __name__ == "__main__":
    key = jax.random.PRNGKey(0)
    kx, kw, kb = jax.random.split(key, 3)

    x = jax.random.normal(kx, (B, CIN, H, W), dtype=jnp.float32)

    # Deterministic Conv2d(3, 1, 3) parameter init (PyTorch-style uniform bound 1/sqrt(fan_in))
    fan_in = CIN * KH * KW
    bound = float(1.0 / np.sqrt(fan_in))
    w = jax.random.uniform(kw, (1, CIN, KH, KW), jnp.float32, -bound, bound)
    b = jax.random.uniform(kb, (1,), jnp.float32, -bound, bound)

    # one-time weight preprocessing, hoisted out of the per-call path
    w8 = build_weight_matrix(w)

    out = maxpool_net_forward(x, w8, b)
    out = jax.block_until_ready(out)

    ref = reference(x, w, b)
    assert out.shape == (B, 1, HO, WO), out.shape
    assert jnp.allclose(out, ref, atol=1e-5, rtol=1e-5), float(jnp.max(jnp.abs(out - ref)))

    print("KERNEL_OK")
</pallas_src>

<mosaic_0001>
module attributes {stable_mosaic.version = 11 : i64} {
  func.func @conv_pool_kernel(%arg0: memref<48x128xf32, #tpu.memory_space<vmem>>, %arg1: memref<8x48xf32, #tpu.memory_space<vmem>>, %arg2: memref<1xf32, #tpu.memory_space<smem>>, %arg3: memref<1x128xf32, #tpu.memory_space<vmem>>) attributes {dimension_semantics = [], scalar_prefetch = 0 : i64, scratch_operands = 0 : i64, tpu.core_type = #tpu.core_type<tc>} {
    %c0 = arith.constant 0 : index
    %c0_0 = arith.constant 0 : index
    %0 = vector.load %arg1[%c0, %c0_0] : memref<8x48xf32, #tpu.memory_space<vmem>>, vector<8x48xf32>
    %c0_1 = arith.constant 0 : index
    %c0_2 = arith.constant 0 : index
    %1 = vector.load %arg0[%c0_1, %c0_2] : memref<48x128xf32, #tpu.memory_space<vmem>>, vector<48x128xf32>
    %cst = arith.constant dense<0.000000e+00> : vector<8x128xf32>
    %2 = tpu.matmul %0, %1, %cst {dimension_numbers = #tpu.dot_dimension_numbers<[1], [0], [0], [1], [0, 0, 1, 1], [], []>} : vector<8x48xf32>, vector<48x128xf32>, vector<8x128xf32> -> vector<8x128xf32>
    %cst_3 = arith.constant dense<0xFF800000> : vector<128xf32>
    %3 = vector.multi_reduction <maximumf>, %2, %cst_3 [0] : vector<8x128xf32> to vector<128xf32>
    %4 = vector.shape_cast %3 : vector<128xf32> to vector<1x128xf32>
    %c0_4 = arith.constant 0 : index
    %5 = memref.load %arg2[%c0_4] : memref<1xf32, #tpu.memory_space<smem>>
    %6 = vector.broadcast %5 : f32 to vector<1x128xf32>
    %7 = arith.addf %4, %6 : vector<1x128xf32>
    %c0_5 = arith.constant 0 : index
    %c0_6 = arith.constant 0 : index
    %8 = vector.load %arg3[%c0_5, %c0_6] : memref<1x128xf32, #tpu.memory_space<vmem>>, vector<1x128xf32>
    tpu.vector_store %arg3[%c0_5, %c0_6], %7 {strides = array<i32>} : memref<1x128xf32, #tpu.memory_space<vmem>>, vector<1x128xf32>,
    return
  }
}

</mosaic_0001>

<llo_original>
// kernel: maxpool_net_forward.1
$region0: #{maxpool_net_forward.1}
  #allocation0 [shape = 'u32[]', space=smem, size = 0x4, offset = 0x4, fixed_abs, tag = 'smem constant byte address 0x4 - core index']
  #allocation1 [shape = 'u32[144,128]{1,0:T(1,128)}', space=vmem, size = 0x12000, scoped, tag = 'internal scratch']
  #allocation2 [shape = 'f32[1]{0:T(128)S(6)}', space=smem, size = 0x200, scoped, tag = 'scoped memory for maxpool_net_forward.1']
  %s0 = inlined_call_operand.vmem [shape: f32[48,128], index: 0, kind: input, shape index: {}]
  %s1 = inlined_call_operand.vmem [shape: f32[8,48], index: 1, kind: input, shape index: {}]
  %s2 = inlined_call_operand.<no memory space> [shape: f32[1], index: 2, kind: input, shape index: {}]
  %s3 = inlined_call_operand.vmem [shape: f32[1,128], index: 3, kind: output, shape index: {}]
  %s4 = sld [smem:[#allocation0]]
  $region22: #{maxpool_net_forward.1} parent=0
    _
  %s6 = ssub.s32 1, %s4
  %s7 = scalar_select 0, %s6, %s4
  %8 = sst [smem:[#allocation2]] %s2
  // Predicated region
  $region2: #{maxpool_net_forward.1} parent=0 // pred_check
    _
  $region3: #{maxpool_net_forward.1} parent=0 // pred_check_branch
    %10 = sbr.rel (0) target = $region5
  $region4: #{maxpool_net_forward.1} parent=0 // pred_region
    _
  $region5: #{maxpool_net_forward.1} parent=0 // pred_fallthru
    _
  // Predicated region
  $region6: #{maxpool_net_forward.1} parent=0 // pred_check
    _
  $region7: #{maxpool_net_forward.1} parent=0 // pred_check_branch
    %12 = sbr.rel (0) target = $region9
  $region8: #{maxpool_net_forward.1} parent=0 // pred_region
    _
  $region9: #{maxpool_net_forward.1} parent=0 // pred_fallthru
    _
  // Predicated region
  $region10: #{maxpool_net_forward.1} parent=0 // pred_check
    _
  $region11: #{maxpool_net_forward.1} parent=0 // pred_check_branch
    %14 = sbr.rel (0) target = $region13
  $region12: #{maxpool_net_forward.1} parent=0 // pred_region
    _
  $region13: #{maxpool_net_forward.1} parent=0 // pred_fallthru
    _
  %v15 = vld [vmem:[%s1] sm:$0xff]
  %v16 = vld [vmem:[%s0] sm:$0xff]
  %v17 = vld [vmem:[%s0 + $0x8] sm:$0xff]
  %v18 = vld [vmem:[%s0 + $0x10] sm:$0xff]
  %v19 = vld [vmem:[%s0 + $0x18] sm:$0xff]
  %v20 = vld [vmem:[%s0 + $0x20] sm:$0xff]
  %v21 = vld [vmem:[%s0 + $0x28] sm:$0xff]
  %vm22 = vcmask 392192
  %v24 = vsel %vm22, %v15, 0
  %26 = vmatprep.subr.mxu0 0.0
  %27 = vmatpush1.msra.mxu0 %v16
  %28 = vmatprep.subr.mxu0 0.0
  %29 = vmatpush1.msra.mxu0 %v17
  %30 = vmatprep.subr.mxu0 0.0
  %31 = vmatpush1.msra.mxu0 %v18
  %32 = vmatprep.subr.mxu0 0.0
  %33 = vmatpush1.msra.mxu0 %v19
  %34 = vmatprep.subr.mxu0 0.0
  %35 = vmatpush1.msra.mxu0 %v20
  %36 = vmatprep.subr.mxu0 0.0
  %37 = vmatpush1.msra.mxu0 %v21
  %38 = vmatprep.subr.mxu0 0.0
  %39 = vmatpush1.msra.mxu0 0.0
  %40 = vmatprep.subr.mxu0 0.0
  %41 = vmatpush1.msra.mxu0 0.0
  %42 = vmatprep.subr.mxu0 0.0
  %43 = vmatpush1.msra.mxu0 0.0
  %44 = vmatprep.subr.mxu0 0.0
  %45 = vmatpush1.msra.mxu0 0.0
  %46 = vmatprep.subr.mxu0 0.0
  %47 = vmatpush1.msra.mxu0 0.0
  %48 = vmatprep.subr.mxu0 0.0
  %49 = vmatpush1.msra.mxu0 0.0
  %50 = vmatprep.subr.mxu0 0.0
  %51 = vmatpush1.msra.mxu0 0.0
  %52 = vmatprep.subr.mxu0 0.0
  %53 = vmatpush1.msra.mxu0 0.0
  %54 = vmatprep.subr.mxu0 0.0
  %55 = vmatpush1.msra.mxu0 0.0
  %56 = vmatprep.subr.mxu0 0.0
  %57 = vmatpush1.msra.mxu0 0.0
  %58 = vmatprep.subr.mxu0 0.0
  %59 = vmatpush1.msra.mxu0 0.0
  %60 = vmatprep.subr.mxu0 0.0
  %61 = vmatpush1.msra.mxu0 0.0
  %62 = vmatprep.subr.mxu0 0.0
  %63 = vmatpush1.msra.mxu0 0.0
  %64 = vmatprep.subr.mxu0 0.0
  %65 = vmatpush1.msra.mxu0 0.0
  %66 = vmatprep.subr.mxu0 0.0
  %67 = vmatpush1.msra.mxu0 0.0
  %68 = vmatprep.subr.mxu0 0.0
  %69 = vmatpush1.msra.mxu0 0.0
  %70 = vmatprep.subr.mxu0 0.0
  %71 = vmatpush1.msra.mxu0 0.0
  %72 = vmatprep.subr.mxu0 0.0
  %73 = vmatpush1.msra.mxu0 0.0
  %74 = vmatprep.subr.mxu0 0.0
  %75 = vmatpush1.msra.mxu0 0.0
  %76 = vmatprep.subr.mxu0 0.0
  %77 = vmatpush1.msra.mxu0 0.0
  %78 = vmatprep.subr.mxu0 0.0
  %79 = vmatpush1.msra.mxu0 0.0
  %80 = vmatprep.subr.mxu0 0.0
  %81 = vmatpush1.msra.mxu0 0.0
  %82 = vmatprep.subr.mxu0 0.0
  %83 = vmatpush1.msra.mxu0 0.0
  %84 = vmatprep.subr.mxu0 0.0
  %85 = vmatpush1.msra.mxu0 0.0
  %86 = vmatprep.subr.mxu0 0.0
  %87 = vmatpush1.msra.mxu0 0.0
  %88 = vmatprep.subr.mxu0 0.0
  %89 = vmatpush1.msra.mxu0 0.0
  %90 = vmatprep.mubr.f32.mxu0 0.0
  %91 = vmatmul.mubr.f32.gmra.mrb[0].mxu0 %v24
  %v92 = vpop.f32.mrb[0].mxu0
  %v93 = vadd.f32 0.0, %v92
  %v94 = vpop.f32.mrb[0].mxu0
  %95 = vdwg.mxu0
  %v96 = vrot.slane %v93, 4
  %v97 = vmax.f32 %v93, %v96
  %v98 = vrot.slane %v97, 2
  %v99 = vmax.f32 %v97, %v98
  %v100 = vrot.slane %v99, 1
  %v101 = vmax.f32 %v99, %v100
  %s102 = sld [smem:[#allocation2]]
  %v103 = vstv %s102
  %v104 = vadd.f32 %v101, %v103
  %105 = vst [vmem:[%s3] sm:$0x1] %v104
  // Predicated region
  $region14: #{maxpool_net_forward.1} parent=0 // pred_check
    _
  $region15: #{maxpool_net_forward.1} parent=0 // pred_check_branch
    %107 = sbr.rel (0) target = $region17
  $region16: #{maxpool_net_forward.1} parent=0 // pred_region
    _
  $region17: #{maxpool_net_forward.1} parent=0 // pred_fallthru
    _
  // Predicated region
  $region18: #{maxpool_net_forward.1} parent=0 // pred_check
    _
  $region19: #{maxpool_net_forward.1} parent=0 // pred_check_branch
    %109 = sbr.rel (0) target = $region21
  $region20: #{maxpool_net_forward.1} parent=0 // pred_region
    _
  $region21: #{maxpool_net_forward.1} parent=0 // pred_fallthru
    _

</llo_original>
